<compile_context>
chip_gen: v7x
topology: tpu7x:2x2x1
jax: 0.10.0
libtpu: 0.0.40
codegen_flags: <defaults>
</compile_context>

<pallas_src>
from types import SimpleNamespace

import jax
import jax.numpy as jnp
from jax.experimental import pallas as pl
from jax.experimental.pallas import tpu as pltpu


_LANES = 128  # lane-dense slab width (vreg lane count)


# ----------------------------------------------------------------------------
# Fused forward kernel
# ----------------------------------------------------------------------------
def _make_fused_kernel(*, S, M, ROW, COL, B, offs):
    f32 = jnp.float32
    SM = S * M

    def kernel(idx_ref, fu_ref, fi_ref, uv_ref, wpack_ref, e0_ref, pred_ref):

        def lrelu(v):
            return jnp.where(v >= 0, v, 0.01 * v)

        def wrow(name, nrows=1, ncols=None):
            # static slice of the packed parameter slab -> (nrows, 128) or (nrows, ncols)
            r = wpack_ref[pl.ds(offs[name], nrows), :]
            return r if ncols is None else r[:, :ncols]

        # ------------------------------------------------------------------
        # one-hot gather matrices from the single packed (B, 2) index array
        # ------------------------------------------------------------------
        idx = idx_ref[...]                                            # (B, 2) int32
        oh0 = (jax.lax.broadcasted_iota(jnp.int32, (B, ROW), 1)
               == idx[:, 0:1]).astype(f32)                            # (B, ROW)
        oh1 = (jax.lax.broadcasted_iota(jnp.int32, (B, COL), 1)
               == idx[:, 1:2]).astype(f32)                            # (B, COL)

        # ------------------------------------------------------------------
        # lane-packed encoder: ONE MXU push per side.
        # uv_ref[0/1] = [ block_diag(U/V) | replicate(block_diag @ att1_w) ]
        #   lanes 0..S*M-1 : all S sims side by side
        #   lanes S*M..    : per-row A3NCF attention score (folded for free)
        # ------------------------------------------------------------------
        xu = jnp.dot(fu_ref[...], uv_ref[0], preferred_element_type=f32)   # (ROW, 128)
        xi = jnp.dot(fi_ref[...], uv_ref[1], preferred_element_type=f32)   # (COL, 128)

        # E_0 written lane-dense (unmasked 128-wide vst); ROW % 8 == 0 keeps the
        # second store sublane-aligned. Wrapper unpacks lanes [:S*M].
        e0_ref[pl.ds(0, ROW), :] = xu
        e0_ref[pl.ds(ROW, COL), :] = xi

        # lane-packed gather: ONE MXU push per side (exact row copies)
        xg = jnp.dot(oh0, xu, preferred_element_type=f32)                  # (B, 128)
        yg = jnp.dot(oh1, xi, preferred_element_type=f32)                  # (B, 128)

        # ------------------------------------------------------------------
        # getSimAtt = 0.5 * (A3NCF attention + direct attention)
        # ------------------------------------------------------------------
        def sim_att(g, b1n, w2n, b2n, dn):
            sc = g[:, SM:SM + M]                       # att1 score, already lane-replicated
            scb = lrelu(sc + wrow(b1n, 1, M))          # Linear(S*M->1) bias + leaky_relu
            att = jax.nn.softmax(scb * wrow(w2n, 1, M) + wrow(b2n, 1, M), axis=-1)
            d = wrow(dn, S, M)                         # softmax(x_att/y_att) precomputed
            g0 = g[:, 0:M]
            gsum = g0
            emb_di = d[0:1, :] * g0
            for s in range(1, S):                      # S small -> unrolled (VPU only)
                gs = g[:, s * M:(s + 1) * M]
                gsum = gsum + gs
                emb_di = emb_di + d[s:s + 1, :] * gs
            return 0.5 * (gsum * att + emb_di)         # mean(1)*att*S == sum*att

        Xe = sim_att(xg, "bx1", "wx2", "bx2", "dx")    # (B, M)
        Ye = sim_att(yg, "by1", "wy2", "by2", "dy")    # (B, M)

        # ------------------------------------------------------------------
        # decoder ('cat') + sigmoid
        #   cat(X,Y) @ W0.T == X @ W0x + Y @ W0y  (two MXU pushes, no lane concat)
        #   NOTE: w1/b1 lanes beyond M/2 are zero-padded; lrelu(0)=0 and the w2
        #   padding lanes are zero, so the padded lanes never leak into `p`.
        # ------------------------------------------------------------------
        w0 = wrow("w0", 2 * M, M)                                           # (2M, M)
        o = lrelu(jnp.dot(Xe, w0[0:M, :], preferred_element_type=f32)
                  + jnp.dot(Ye, w0[M:2 * M, :], preferred_element_type=f32)
                  + wrow("b0", 1, M))
        o = lrelu(jnp.dot(o, wrow("w1", M, M // 2), preferred_element_type=f32)
                  + wrow("b1", 1, M // 2))                                  # (B, M/2)
        # final prediction on the MXU against a lane-replicated w2 -> p is
        # replicated across all 128 lanes; one unmasked lane-dense store.
        p = jnp.dot(o, wrow("w2rep", M // 2), preferred_element_type=f32)   # (B, 128)
        pred_ref[...] = jax.nn.sigmoid(p + wrow("b2"))                      # +decoder2 bias

    return kernel


# ----------------------------------------------------------------------------
# Parameter packing + init (deterministic, shapes from MF.__init__)
# ----------------------------------------------------------------------------
def _pack_params(entries):
    """entries: list of (name, array with <= 128 columns). Pads cols to 128."""
    offs, rows, r = {}, [], 0
    for name, a in entries:
        a = jnp.asarray(a, jnp.float32)
        if a.ndim == 1:
            a = a.reshape(1, -1)
        assert a.shape[1] <= _LANES
        if a.shape[1] < _LANES:
            a = jnp.pad(a, ((0, 0), (0, _LANES - a.shape[1])))
        offs[name] = r
        r += a.shape[0]
        rows.append(a)
    return jnp.concatenate(rows, axis=0), offs


def _block_diag(W):
    """(S, K, M) -> (S*K, S*M) block-diagonal slab."""
    S, K, M = W.shape
    out = jnp.zeros((S * K, S * M), jnp.float32)
    for s in range(S):
        out = out.at[s * K:(s + 1) * K, s * M:(s + 1) * M].set(W[s])
    return out


def init_params(key, opt):
    S, K, M = opt.num_sim, opt.in_features, opt.mid_dim
    assert S * M + M <= _LANES, "score-fold layout needs S*M + M <= 128"
    ks = jax.random.split(key, 8)

    def kaiming_normal(k, shape, fan_in):
        return jax.random.normal(k, shape, jnp.float32) * jnp.sqrt(2.0 / fan_in)

    def linear_init(k, out_f, in_f):
        k1, k2 = jax.random.split(k)
        bound = 1.0 / jnp.sqrt(in_f)
        w = jax.random.uniform(k1, (out_f, in_f), jnp.float32, -bound, bound)
        b = jax.random.uniform(k2, (out_f,), jnp.float32, -bound, bound)
        return w, b

    U = kaiming_normal(ks[0], (S, K, M), K)
    V = kaiming_normal(ks[1], (S, K, M), K)

    # attention linears: constant init per att_init (weight = 1, bias = 0)
    wx1 = jnp.ones((1, M * S), jnp.float32); bx1 = jnp.zeros((1,), jnp.float32)
    wx2 = jnp.ones((M, 1), jnp.float32);     bx2 = jnp.zeros((M,), jnp.float32)
    wy1 = jnp.ones((1, M * S), jnp.float32); by1 = jnp.zeros((1,), jnp.float32)
    wy2 = jnp.ones((M, 1), jnp.float32);     by2 = jnp.zeros((M,), jnp.float32)
    x_att = jnp.ones((S,), jnp.float32)
    y_att = jnp.ones((S,), jnp.float32)

    w0, b0 = linear_init(ks[2], M, 2 * M)           # decoder0: Linear(2M, M)
    w1, b1 = linear_init(ks[3], M // 2, M)          # decoder1: Linear(M, M/2)
    w2, b2 = linear_init(ks[4], 1, M // 2)          # decoder2: Linear(M/2, 1)
    XYW = kaiming_normal(ks[5], (M, M), M)          # unused for decoder_type='cat'
    W_vec = kaiming_normal(ks[6], (1, M), M)        # unused for decoder_type='cat'

    # --- fused encoder weights: block-diag + folded attention-score lanes ----
    U_bd = _block_diag(U)                           # (S*K, S*M)
    V_bd = _block_diag(V)
    u_score = U_bd @ wx1.reshape(S * M, 1)          # (S*K, 1): per-row att1 score
    v_score = V_bd @ wy1.reshape(S * M, 1)
    pad = _LANES - S * M
    U_aug = jnp.concatenate([U_bd, jnp.broadcast_to(u_score, (S * K, pad))], axis=1)
    V_aug = jnp.concatenate([V_bd, jnp.broadcast_to(v_score, (S * K, pad))], axis=1)
    UV_aug = jnp.stack([U_aug, V_aug], axis=0)      # (2, S*K, 128) -> ONE DMA

    # directAtt softmax precomputed (inference-only; re-derive in-kernel if a
    # backward pass over x_att/y_att is ever needed).
    dX = jax.nn.softmax(x_att)
    dY = jax.nn.softmax(y_att)

    # one packed (rows, 128) lane-dense f32 slab: 8-aligned blocks first,
    # scalar rows (replicated across all lanes) last.
    wpack, offs = _pack_params([
        ("w0", w0.T),                                                   # (2M, M)
        ("w1", w1.T),                                                   # (M, M/2) zero-padded
        ("w2rep", jnp.broadcast_to(w2.reshape(M // 2, 1), (M // 2, _LANES))),
        ("wx2", wx2.T), ("bx2", bx2.reshape(1, M)),
        ("wy2", wy2.T), ("by2", by2.reshape(1, M)),
        ("b0", b0.reshape(1, M)),
        ("b1", b1.reshape(1, M // 2)),                                  # zero-padded
        ("bx1", jnp.full((1, _LANES), bx1[0])),
        ("by1", jnp.full((1, _LANES), by1[0])),
        ("b2", jnp.full((1, _LANES), b2[0])),
        ("dx", jnp.broadcast_to(dX[:, None], (S, _LANES))),
        ("dy", jnp.broadcast_to(dY[:, None], (S, _LANES))),
    ])

    params = dict(
        UV_aug=UV_aug, wpack=wpack, offs=offs,
        # unpacked copies kept only for the pure-JAX reference check
        U=U, V=V,
        wx1_r=wx1.reshape(S, M), bx1=bx1.reshape(1, 1), wx2t=wx2.T, bx2=bx2.reshape(1, M),
        wy1_r=wy1.reshape(S, M), by1=by1.reshape(1, 1), wy2t=wy2.T, by2=by2.reshape(1, M),
        x_att=x_att.reshape(1, S), y_att=y_att.reshape(1, S),
        w0x=w0.T[:M], w0y=w0.T[M:], b0=b0.reshape(1, M),
        w1t=w1.T, b1=b1.reshape(1, M // 2),
        w2t=w2.T, b2=b2.reshape(1, 1),
        XYW=XYW, W_vec=W_vec,
    )
    return params


# ----------------------------------------------------------------------------
# MF.forward
# ----------------------------------------------------------------------------
def mf_forward(params, opt, F_u, F_i, idx0, idx1, adj_net_homo, adj_net_hete):
    del adj_net_homo, adj_net_hete  # only used by NIP layers (num_layer > 0), see TODO
    S, K, M = opt.num_sim, opt.in_features, opt.mid_dim
    ROW = opt.row_num
    COL = F_i.shape[1]
    B = idx0.shape[0]

    # wrapper-side layout plumbing (negligible): lane-pack the S sims and the
    # two index vectors so the kernel sees 5 input DMAs total.
    F_u_cat = jnp.transpose(F_u, (1, 0, 2)).reshape(ROW, S * K)
    F_i_cat = jnp.transpose(F_i, (1, 0, 2)).reshape(COL, S * K)
    idx = jnp.stack([idx0.astype(jnp.int32), idx1.astype(jnp.int32)], axis=1)  # (B, 2)

    kernel = _make_fused_kernel(S=S, M=M, ROW=ROW, COL=COL, B=B, offs=params["offs"])
    vmem = pl.BlockSpec(memory_space=pltpu.MemorySpace.VMEM)

    # NOTE: whole-array VMEM blocks, no grid — everything (<0.5 MB) is resident.
    # Scaling path (large ROW/COL/B): keep F_*/E_0 in HBM (memory_space=pl.ANY),
    # add a batch grid marked "parallel" (2 TCs on v7x) and raise
    # vmem_limit_bytes via pltpu.CompilerParams before the resident design OOMs.
    E_cat, pred_lanes = pl.pallas_call(
        kernel,
        out_shape=(
            jax.ShapeDtypeStruct((ROW + COL, _LANES), jnp.float32),  # lane-dense E_0 slab
            jax.ShapeDtypeStruct((B, _LANES), jnp.float32),          # lane-dense pred slab
        ),
        in_specs=[vmem, vmem, vmem, vmem, vmem],
        out_specs=(vmem, vmem),
    )(idx, F_u_cat, F_i_cat, params["UV_aug"], params["wpack"])

    pred = pred_lanes[:, 0]
    # unpack the lane-packed E_0 slab back to (S, ROW+COL, M)
    E_0 = E_cat[:, :S * M].reshape(ROW + COL, S, M).transpose(1, 0, 2)

    # dropout(E_0): eval mode -> identity.
    # TODO(synk): NIP propagation layers (num_layer > 0) are not reproduced — the NIP
    # class is not defined in the provided reference source; with num_layer = 0,
    # E_ls = [E_0] and getEmbedMid(E_ls) == E_0 exactly (this config).
    E_ls = [E_0]
    return pred, E_ls


# ----------------------------------------------------------------------------
# Pure-JAX reference (for correctness check)
# ----------------------------------------------------------------------------
def mf_forward_ref(params, opt, F_u, F_i, idx0, idx1):
    row_num, S = opt.row_num, opt.num_sim
    X_u = jnp.einsum("snk,skm->snm", F_u, params["U"])
    X_i = jnp.einsum("snk,skm->snm", F_i, params["V"])
    E_0 = jnp.concatenate([X_u, X_i], axis=1)
    embedMid = E_0
    X, Y = embedMid[:, :row_num, :], embedMid[:, row_num:, :]
    Xg = jnp.transpose(X[:, idx0, :], (1, 0, 2))
    Yg = jnp.transpose(Y[:, idx1, :], (1, 0, 2))

    def lrelu(v):
        return jnp.where(v >= 0, v, 0.01 * v)

    def sim_att(G, w1r, b1, w2t, b2, dlog):
        s = lrelu(jnp.einsum("bsm,sm->b", G, w1r)[:, None] + b1)
        att = jax.nn.softmax(s * w2t + b2, axis=-1)
        emb_a3 = G.mean(axis=1) * att * S
        d = jax.nn.softmax(dlog, axis=-1)
        emb_di = jnp.einsum("s,bsm->bm", d[0], G)
        return 0.5 * (emb_a3 + emb_di)

    Xe = sim_att(Xg, params["wx1_r"], params["bx1"], params["wx2t"], params["bx2"], params["x_att"])
    Ye = sim_att(Yg, params["wy1_r"], params["by1"], params["wy2t"], params["by2"], params["y_att"])
    o = lrelu(Xe @ params["w0x"] + Ye @ params["w0y"] + params["b0"])
    o = lrelu(o @ params["w1t"] + params["b1"])
    p = o @ params["w2t"] + params["b2"]
    return jax.nn.sigmoid(p).reshape(-1), E_0


if __name__ == "__main__":
    opt = SimpleNamespace(
        seed=1, initFunType="kaiming_normal", in_features=32, mid_dim=32,
        num_layer=0, actType="relu", row_num=16, dropProb=0.1, cudaFlag=False,
        num_sim=3, decoder_type="cat", sigmoid_flag=True, alp=0.5, beta=0.5,
        NIPFusionType="add",
    )
    col_num = 16
    n_pairs = 8

    key = jax.random.PRNGKey(0)
    kp, kf_u, kf_i, ki0, ki1 = jax.random.split(key, 5)
    params = init_params(kp, opt)

    F_u = jax.random.normal(kf_u, (opt.num_sim, opt.row_num, opt.in_features), jnp.float32)
    F_i = jax.random.normal(kf_i, (opt.num_sim, col_num, opt.in_features), jnp.float32)
    idx0 = jax.random.randint(ki0, (n_pairs,), 0, opt.row_num)
    idx1 = jax.random.randint(ki1, (n_pairs,), 0, col_num)
    adj_net_homo = jnp.zeros((opt.num_sim, opt.row_num + col_num, opt.row_num + col_num), jnp.float32)
    adj_net_hete = jnp.zeros_like(adj_net_homo)

    pred, E_ls = mf_forward(params, opt, F_u, F_i, idx0, idx1, adj_net_homo, adj_net_hete)
    pred = jax.block_until_ready(pred)
    E_0 = jax.block_until_ready(E_ls[0])

    pred_ref, E0_ref = mf_forward_ref(params, opt, F_u, F_i, idx0, idx1)
    assert pred.shape == (n_pairs,)
    assert jnp.allclose(E_0, E0_ref, atol=1e-4, rtol=1e-4), "E_0 mismatch"
    assert jnp.allclose(pred, pred_ref, atol=1e-4, rtol=1e-4), (pred, pred_ref)

    print("KERNEL_OK")
</pallas_src>

<mosaic_0001>
module attributes {stable_mosaic.version = 11 : i64} {
  func.func @kernel(%arg0: memref<8x2xi32, #tpu.memory_space<vmem>>, %arg1: memref<16x96xf32, #tpu.memory_space<vmem>>, %arg2: memref<16x96xf32, #tpu.memory_space<vmem>>, %arg3: memref<2x96x128xf32, #tpu.memory_space<vmem>>, %arg4: memref<127x128xf32, #tpu.memory_space<vmem>>, %arg5: memref<32x128xf32, #tpu.memory_space<vmem>>, %arg6: memref<8x128xf32, #tpu.memory_space<vmem>>) attributes {dimension_semantics = [], scalar_prefetch = 0 : i64, scratch_operands = 0 : i64, tpu.core_type = #tpu.core_type<tc>} {
    %c0 = arith.constant 0 : index
    %c0_0 = arith.constant 0 : index
    %0 = vector.load %arg0[%c0, %c0_0] : memref<8x2xi32, #tpu.memory_space<vmem>>, vector<8x2xi32>
    %1 = tpu.iota {dimensions = array<i32: 1>} : vector<8x16xi32>
    %2 = vector.extract_strided_slice %0 {offsets = [0, 0], sizes = [8, 1], strides = [1, 1]} : vector<8x2xi32> to vector<8x1xi32>
    %3 = vector.broadcast %2 : vector<8x1xi32> to vector<8x16xi32>
    %4 = arith.cmpi eq, %1, %3 : vector<8x16xi32>
    %5 = arith.extui %4 : vector<8x16xi1> to vector<8x16xi32>
    %6 = arith.sitofp %5 : vector<8x16xi32> to vector<8x16xf32>
    %7 = tpu.iota {dimensions = array<i32: 1>} : vector<8x16xi32>
    %8 = vector.extract_strided_slice %0 {offsets = [0, 1], sizes = [8, 1], strides = [1, 1]} : vector<8x2xi32> to vector<8x1xi32>
    %9 = vector.broadcast %8 : vector<8x1xi32> to vector<8x16xi32>
    %10 = arith.cmpi eq, %7, %9 : vector<8x16xi32>
    %11 = arith.extui %10 : vector<8x16xi1> to vector<8x16xi32>
    %12 = arith.sitofp %11 : vector<8x16xi32> to vector<8x16xf32>
    %c0_1 = arith.constant 0 : index
    %c0_2 = arith.constant 0 : index
    %13 = vector.load %arg1[%c0_1, %c0_2] : memref<16x96xf32, #tpu.memory_space<vmem>>, vector<16x96xf32>
    %c0_3 = arith.constant 0 : index
    %c0_4 = arith.constant 0 : index
    %c0_5 = arith.constant 0 : index
    %14 = vector.load %arg3[%c0_3, %c0_4, %c0_5] : memref<2x96x128xf32, #tpu.memory_space<vmem>>, vector<1x96x128xf32>
    %15 = vector.shape_cast %14 : vector<1x96x128xf32> to vector<96x128xf32>
    %cst = arith.constant dense<0.000000e+00> : vector<16x128xf32>
    %16 = tpu.matmul %13, %15, %cst {dimension_numbers = #tpu.dot_dimension_numbers<[1], [0], [0], [1], [0, 0, 1, 1], [], []>} : vector<16x96xf32>, vector<96x128xf32>, vector<16x128xf32> -> vector<16x128xf32>
    %c0_6 = arith.constant 0 : index
    %c0_7 = arith.constant 0 : index
    %17 = vector.load %arg2[%c0_6, %c0_7] : memref<16x96xf32, #tpu.memory_space<vmem>>, vector<16x96xf32>
    %c1 = arith.constant 1 : index
    %c0_8 = arith.constant 0 : index
    %c0_9 = arith.constant 0 : index
    %18 = vector.load %arg3[%c1, %c0_8, %c0_9] : memref<2x96x128xf32, #tpu.memory_space<vmem>>, vector<1x96x128xf32>
    %19 = vector.shape_cast %18 : vector<1x96x128xf32> to vector<96x128xf32>
    %cst_10 = arith.constant dense<0.000000e+00> : vector<16x128xf32>
    %20 = tpu.matmul %17, %19, %cst_10 {dimension_numbers = #tpu.dot_dimension_numbers<[1], [0], [0], [1], [0, 0, 1, 1], [], []>} : vector<16x96xf32>, vector<96x128xf32>, vector<16x128xf32> -> vector<16x128xf32>
    %c0_11 = arith.constant 0 : index
    %c0_12 = arith.constant 0 : index
    %21 = vector.load %arg5[%c0_11, %c0_12] : memref<32x128xf32, #tpu.memory_space<vmem>>, vector<16x128xf32>
    tpu.vector_store %arg5[%c0_11, %c0_12], %16 {strides = array<i32>} : memref<32x128xf32, #tpu.memory_space<vmem>>, vector<16x128xf32>,
    %c16 = arith.constant 16 : index
    %c0_13 = arith.constant 0 : index
    %22 = vector.load %arg5[%c16, %c0_13] : memref<32x128xf32, #tpu.memory_space<vmem>>, vector<16x128xf32>
    tpu.vector_store %arg5[%c16, %c0_13], %20 {strides = array<i32>} : memref<32x128xf32, #tpu.memory_space<vmem>>, vector<16x128xf32>,
    %cst_14 = arith.constant dense<0.000000e+00> : vector<8x128xf32>
    %23 = tpu.matmul %6, %16, %cst_14 {dimension_numbers = #tpu.dot_dimension_numbers<[1], [0], [0], [1], [0, 0, 1, 1], [], []>} : vector<8x16xf32>, vector<16x128xf32>, vector<8x128xf32> -> vector<8x128xf32>
    %cst_15 = arith.constant dense<0.000000e+00> : vector<8x128xf32>
    %24 = tpu.matmul %12, %20, %cst_15 {dimension_numbers = #tpu.dot_dimension_numbers<[1], [0], [0], [1], [0, 0, 1, 1], [], []>} : vector<8x16xf32>, vector<16x128xf32>, vector<8x128xf32> -> vector<8x128xf32>
    %25 = vector.extract_strided_slice %23 {offsets = [0, 96], sizes = [8, 32], strides = [1, 1]} : vector<8x128xf32> to vector<8x32xf32>
    %c118 = arith.constant 118 : index
    %c0_16 = arith.constant 0 : index
    %26 = vector.load %arg4[%c118, %c0_16] : memref<127x128xf32, #tpu.memory_space<vmem>>, vector<1x128xf32>
    %27 = vector.extract_strided_slice %26 {offsets = [0, 0], sizes = [1, 32], strides = [1, 1]} : vector<1x128xf32> to vector<1x32xf32>
    %28 = vector.broadcast %27 : vector<1x32xf32> to vector<8x32xf32>
    %29 = arith.addf %25, %28 : vector<8x32xf32>
    %cst_17 = arith.constant 0.000000e+00 : f32
    %30 = vector.broadcast %cst_17 : f32 to vector<8x32xf32>
    %31 = arith.cmpf oge, %29, %30 : vector<8x32xf32>
    %cst_18 = arith.constant 0.00999999977 : f32
    %32 = vector.broadcast %cst_18 : f32 to vector<8x32xf32>
    %33 = arith.mulf %32, %29 : vector<8x32xf32>
    %34 = arith.select %31, %29, %33 : vector<8x32xi1>, vector<8x32xf32>
    %c112 = arith.constant 112 : index
    %c0_19 = arith.constant 0 : index
    %35 = vector.load %arg4[%c112, %c0_19] : memref<127x128xf32, #tpu.memory_space<vmem>>, vector<1x128xf32>
    %36 = vector.extract_strided_slice %35 {offsets = [0, 0], sizes = [1, 32], strides = [1, 1]} : vector<1x128xf32> to vector<1x32xf32>
    %37 = vector.broadcast %36 : vector<1x32xf32> to vector<8x32xf32>
    %38 = arith.mulf %34, %37 : vector<8x32xf32>
    %c113 = arith.constant 113 : index
    %c0_20 = arith.constant 0 : index
    %39 = vector.load %arg4[%c113, %c0_20] : memref<127x128xf32, #tpu.memory_space<vmem>>, vector<1x128xf32>
    %40 = vector.extract_strided_slice %39 {offsets = [0, 0], sizes = [1, 32], strides = [1, 1]} : vector<1x128xf32> to vector<1x32xf32>
    %41 = vector.broadcast %40 : vector<1x32xf32> to vector<8x32xf32>
    %42 = arith.addf %38, %41 : vector<8x32xf32>
    %cst_21 = arith.constant dense<0xFF800000> : vector<8xf32>
    %43 = vector.multi_reduction <maximumf>, %42, %cst_21 [1] : vector<8x32xf32> to vector<8xf32>
    %cst_22 = arith.constant 0xFF800000 : f32
    %44 = vector.broadcast %cst_22 : f32 to vector<8xf32>
    %45 = arith.maximumf %44, %43 : vector<8xf32>
    %46 = vector.shape_cast %45 : vector<8xf32> to vector<8x1xf32>
    %47 = vector.broadcast %46 : vector<8x1xf32> to vector<8x32xf32>
    %48 = arith.subf %42, %47 : vector<8x32xf32>
    %49 = math.exp %48 : vector<8x32xf32>
    %cst_23 = arith.constant dense<0.000000e+00> : vector<8xf32>
    %50 = vector.multi_reduction <add>, %49, %cst_23 [1] : vector<8x32xf32> to vector<8xf32>
    %51 = vector.shape_cast %50 : vector<8xf32> to vector<8x1xf32>
    %52 = vector.broadcast %51 : vector<8x1xf32> to vector<8x32xf32>
    %53 = arith.divf %49, %52 : vector<8x32xf32>
    %c121 = arith.constant 121 : index
    %c0_24 = arith.constant 0 : index
    %54 = vector.load %arg4[%c121, %c0_24] : memref<127x128xf32, #tpu.memory_space<vmem>>, vector<3x128xf32>
    %55 = vector.extract_strided_slice %54 {offsets = [0, 0], sizes = [3, 32], strides = [1, 1]} : vector<3x128xf32> to vector<3x32xf32>
    %56 = vector.extract_strided_slice %23 {offsets = [0, 0], sizes = [8, 32], strides = [1, 1]} : vector<8x128xf32> to vector<8x32xf32>
    %57 = vector.extract_strided_slice %55 {offsets = [0, 0], sizes = [1, 32], strides = [1, 1]} : vector<3x32xf32> to vector<1x32xf32>
    %58 = vector.broadcast %57 : vector<1x32xf32> to vector<8x32xf32>
    %59 = arith.mulf %58, %56 : vector<8x32xf32>
    %60 = vector.extract_strided_slice %23 {offsets = [0, 32], sizes = [8, 32], strides = [1, 1]} : vector<8x128xf32> to vector<8x32xf32>
    %61 = arith.addf %56, %60 : vector<8x32xf32>
    %62 = vector.extract_strided_slice %55 {offsets = [1, 0], sizes = [1, 32], strides = [1, 1]} : vector<3x32xf32> to vector<1x32xf32>
    %63 = vector.broadcast %62 : vector<1x32xf32> to vector<8x32xf32>
    %64 = arith.mulf %63, %60 : vector<8x32xf32>
    %65 = arith.addf %59, %64 : vector<8x32xf32>
    %66 = vector.extract_strided_slice %23 {offsets = [0, 64], sizes = [8, 32], strides = [1, 1]} : vector<8x128xf32> to vector<8x32xf32>
    %67 = arith.addf %61, %66 : vector<8x32xf32>
    %68 = vector.extract_strided_slice %55 {offsets = [2, 0], sizes = [1, 32], strides = [1, 1]} : vector<3x32xf32> to vector<1x32xf32>
    %69 = vector.broadcast %68 : vector<1x32xf32> to vector<8x32xf32>
    %70 = arith.mulf %69, %66 : vector<8x32xf32>
    %71 = arith.addf %65, %70 : vector<8x32xf32>
    %72 = arith.mulf %67, %53 : vector<8x32xf32>
    %73 = arith.addf %72, %71 : vector<8x32xf32>
    %cst_25 = arith.constant 5.000000e-01 : f32
    %74 = vector.broadcast %cst_25 : f32 to vector<8x32xf32>
    %75 = arith.mulf %74, %73 : vector<8x32xf32>
    %76 = vector.extract_strided_slice %24 {offsets = [0, 96], sizes = [8, 32], strides = [1, 1]} : vector<8x128xf32> to vector<8x32xf32>
    %c119 = arith.constant 119 : index
    %c0_26 = arith.constant 0 : index
    %77 = vector.load %arg4[%c119, %c0_26] : memref<127x128xf32, #tpu.memory_space<vmem>>, vector<1x128xf32>
    %78 = vector.extract_strided_slice %77 {offsets = [0, 0], sizes = [1, 32], strides = [1, 1]} : vector<1x128xf32> to vector<1x32xf32>
    %79 = vector.broadcast %78 : vector<1x32xf32> to vector<8x32xf32>
    %80 = arith.addf %76, %79 : vector<8x32xf32>
    %cst_27 = arith.constant 0.000000e+00 : f32
    %81 = vector.broadcast %cst_27 : f32 to vector<8x32xf32>
    %82 = arith.cmpf oge, %80, %81 : vector<8x32xf32>
    %cst_28 = arith.constant 0.00999999977 : f32
    %83 = vector.broadcast %cst_28 : f32 to vector<8x32xf32>
    %84 = arith.mulf %83, %80 : vector<8x32xf32>
    %85 = arith.select %82, %80, %84 : vector<8x32xi1>, vector<8x32xf32>
    %c114 = arith.constant 114 : index
    %c0_29 = arith.constant 0 : index
    %86 = vector.load %arg4[%c114, %c0_29] : memref<127x128xf32, #tpu.memory_space<vmem>>, vector<1x128xf32>
    %87 = vector.extract_strided_slice %86 {offsets = [0, 0], sizes = [1, 32], strides = [1, 1]} : vector<1x128xf32> to vector<1x32xf32>
    %88 = vector.broadcast %87 : vector<1x32xf32> to vector<8x32xf32>
    %89 = arith.mulf %85, %88 : vector<8x32xf32>
    %c115 = arith.constant 115 : index
    %c0_30 = arith.constant 0 : index
    %90 = vector.load %arg4[%c115, %c0_30] : memref<127x128xf32, #tpu.memory_space<vmem>>, vector<1x128xf32>
    %91 = vector.extract_strided_slice %90 {offsets = [0, 0], sizes = [1, 32], strides = [1, 1]} : vector<1x128xf32> to vector<1x32xf32>
    %92 = vector.broadcast %91 : vector<1x32xf32> to vector<8x32xf32>
    %93 = arith.addf %89, %92 : vector<8x32xf32>
    %cst_31 = arith.constant dense<0xFF800000> : vector<8xf32>
    %94 = vector.multi_reduction <maximumf>, %93, %cst_31 [1] : vector<8x32xf32> to vector<8xf32>
    %cst_32 = arith.constant 0xFF800000 : f32
    %95 = vector.broadcast %cst_32 : f32 to vector<8xf32>
    %96 = arith.maximumf %95, %94 : vector<8xf32>
    %97 = vector.shape_cast %96 : vector<8xf32> to vector<8x1xf32>
    %98 = vector.broadcast %97 : vector<8x1xf32> to vector<8x32xf32>
    %99 = arith.subf %93, %98 : vector<8x32xf32>
    %100 = math.exp %99 : vector<8x32xf32>
    %cst_33 = arith.constant dense<0.000000e+00> : vector<8xf32>
    %101 = vector.multi_reduction <add>, %100, %cst_33 [1] : vector<8x32xf32> to vector<8xf32>
    %102 = vector.shape_cast %101 : vector<8xf32> to vector<8x1xf32>
    %103 = vector.broadcast %102 : vector<8x1xf32> to vector<8x32xf32>
    %104 = arith.divf %100, %103 : vector<8x32xf32>
    %c124 = arith.constant 124 : index
    %c0_34 = arith.constant 0 : index
    %105 = vector.load %arg4[%c124, %c0_34] : memref<127x128xf32, #tpu.memory_space<vmem>>, vector<3x128xf32>
    %106 = vector.extract_strided_slice %105 {offsets = [0, 0], sizes = [3, 32], strides = [1, 1]} : vector<3x128xf32> to vector<3x32xf32>
    %107 = vector.extract_strided_slice %24 {offsets = [0, 0], sizes = [8, 32], strides = [1, 1]} : vector<8x128xf32> to vector<8x32xf32>
    %108 = vector.extract_strided_slice %106 {offsets = [0, 0], sizes = [1, 32], strides = [1, 1]} : vector<3x32xf32> to vector<1x32xf32>
    %109 = vector.broadcast %108 : vector<1x32xf32> to vector<8x32xf32>
    %110 = arith.mulf %109, %107 : vector<8x32xf32>
    %111 = vector.extract_strided_slice %24 {offsets = [0, 32], sizes = [8, 32], strides = [1, 1]} : vector<8x128xf32> to vector<8x32xf32>
    %112 = arith.addf %107, %111 : vector<8x32xf32>
    %113 = vector.extract_strided_slice %106 {offsets = [1, 0], sizes = [1, 32], strides = [1, 1]} : vector<3x32xf32> to vector<1x32xf32>
    %114 = vector.broadcast %113 : vector<1x32xf32> to vector<8x32xf32>
    %115 = arith.mulf %114, %111 : vector<8x32xf32>
    %116 = arith.addf %110, %115 : vector<8x32xf32>
    %117 = vector.extract_strided_slice %24 {offsets = [0, 64], sizes = [8, 32], strides = [1, 1]} : vector<8x128xf32> to vector<8x32xf32>
    %118 = arith.addf %112, %117 : vector<8x32xf32>
    %119 = vector.extract_strided_slice %106 {offsets = [2, 0], sizes = [1, 32], strides = [1, 1]} : vector<3x32xf32> to vector<1x32xf32>
    %120 = vector.broadcast %119 : vector<1x32xf32> to vector<8x32xf32>
    %121 = arith.mulf %120, %117 : vector<8x32xf32>
    %122 = arith.addf %116, %121 : vector<8x32xf32>
    %123 = arith.mulf %118, %104 : vector<8x32xf32>
    %124 = arith.addf %123, %122 : vector<8x32xf32>
    %cst_35 = arith.constant 5.000000e-01 : f32
    %125 = vector.broadcast %cst_35 : f32 to vector<8x32xf32>
    %126 = arith.mulf %125, %124 : vector<8x32xf32>
    %c0_36 = arith.constant 0 : index
    %c0_37 = arith.constant 0 : index
    %127 = vector.load %arg4[%c0_36, %c0_37] : memref<127x128xf32, #tpu.memory_space<vmem>>, vector<64x128xf32>
    %128 = vector.extract_strided_slice %127 {offsets = [0, 0], sizes = [64, 32], strides = [1, 1]} : vector<64x128xf32> to vector<64x32xf32>
    %129 = vector.extract_strided_slice %128 {offsets = [0, 0], sizes = [32, 32], strides = [1, 1]} : vector<64x32xf32> to vector<32x32xf32>
    %cst_38 = arith.constant dense<0.000000e+00> : vector<8x32xf32>
    %130 = tpu.matmul %75, %129, %cst_38 {dimension_numbers = #tpu.dot_dimension_numbers<[1], [0], [0], [1], [0, 0, 1, 1], [], []>} : vector<8x32xf32>, vector<32x32xf32>, vector<8x32xf32> -> vector<8x32xf32>
    %131 = vector.extract_strided_slice %128 {offsets = [32, 0], sizes = [32, 32], strides = [1, 1]} : vector<64x32xf32> to vector<32x32xf32>
    %cst_39 = arith.constant dense<0.000000e+00> : vector<8x32xf32>
    %132 = tpu.matmul %126, %131, %cst_39 {dimension_numbers = #tpu.dot_dimension_numbers<[1], [0], [0], [1], [0, 0, 1, 1], [], []>} : vector<8x32xf32>, vector<32x32xf32>, vector<8x32xf32> -> vector<8x32xf32>
    %133 = arith.addf %130, %132 : vector<8x32xf32>
    %c116 = arith.constant 116 : index
    %c0_40 = arith.constant 0 : index
    %134 = vector.load %arg4[%c116, %c0_40] : memref<127x128xf32, #tpu.memory_space<vmem>>, vector<1x128xf32>
    %135 = vector.extract_strided_slice %134 {offsets = [0, 0], sizes = [1, 32], strides = [1, 1]} : vector<1x128xf32> to vector<1x32xf32>
    %136 = vector.broadcast %135 : vector<1x32xf32> to vector<8x32xf32>
    %137 = arith.addf %133, %136 : vector<8x32xf32>
    %cst_41 = arith.constant 0.000000e+00 : f32
    %138 = vector.broadcast %cst_41 : f32 to vector<8x32xf32>
    %139 = arith.cmpf oge, %137, %138 : vector<8x32xf32>
    %cst_42 = arith.constant 0.00999999977 : f32
    %140 = vector.broadcast %cst_42 : f32 to vector<8x32xf32>
    %141 = arith.mulf %140, %137 : vector<8x32xf32>
    %142 = arith.select %139, %137, %141 : vector<8x32xi1>, vector<8x32xf32>
    %c64 = arith.constant 64 : index
    %c0_43 = arith.constant 0 : index
    %143 = vector.load %arg4[%c64, %c0_43] : memref<127x128xf32, #tpu.memory_space<vmem>>, vector<32x128xf32>
    %144 = vector.extract_strided_slice %143 {offsets = [0, 0], sizes = [32, 16], strides = [1, 1]} : vector<32x128xf32> to vector<32x16xf32>
    %cst_44 = arith.constant dense<0.000000e+00> : vector<8x16xf32>
    %145 = tpu.matmul %142, %144, %cst_44 {dimension_numbers = #tpu.dot_dimension_numbers<[1], [0], [0], [1], [0, 0, 1, 1], [], []>} : vector<8x32xf32>, vector<32x16xf32>, vector<8x16xf32> -> vector<8x16xf32>
    %c117 = arith.constant 117 : index
    %c0_45 = arith.constant 0 : index
    %146 = vector.load %arg4[%c117, %c0_45] : memref<127x128xf32, #tpu.memory_space<vmem>>, vector<1x128xf32>
    %147 = vector.extract_strided_slice %146 {offsets = [0, 0], sizes = [1, 16], strides = [1, 1]} : vector<1x128xf32> to vector<1x16xf32>
    %148 = vector.broadcast %147 : vector<1x16xf32> to vector<8x16xf32>
    %149 = arith.addf %145, %148 : vector<8x16xf32>
    %cst_46 = arith.constant 0.000000e+00 : f32
    %150 = vector.broadcast %cst_46 : f32 to vector<8x16xf32>
    %151 = arith.cmpf oge, %149, %150 : vector<8x16xf32>
    %cst_47 = arith.constant 0.00999999977 : f32
    %152 = vector.broadcast %cst_47 : f32 to vector<8x16xf32>
    %153 = arith.mulf %152, %149 : vector<8x16xf32>
    %154 = arith.select %151, %149, %153 : vector<8x16xi1>, vector<8x16xf32>
    %c96 = arith.constant 96 : index
    %c0_48 = arith.constant 0 : index
    %155 = vector.load %arg4[%c96, %c0_48] : memref<127x128xf32, #tpu.memory_space<vmem>>, vector<16x128xf32>
    %cst_49 = arith.constant dense<0.000000e+00> : vector<8x128xf32>
    %156 = tpu.matmul %154, %155, %cst_49 {dimension_numbers = #tpu.dot_dimension_numbers<[1], [0], [0], [1], [0, 0, 1, 1], [], []>} : vector<8x16xf32>, vector<16x128xf32>, vector<8x128xf32> -> vector<8x128xf32>
    %c120 = arith.constant 120 : index
    %c0_50 = arith.constant 0 : index
    %157 = vector.load %arg4[%c120, %c0_50] : memref<127x128xf32, #tpu.memory_space<vmem>>, vector<1x128xf32>
    %158 = vector.broadcast %157 : vector<1x128xf32> to vector<8x128xf32>
    %159 = arith.addf %156, %158 : vector<8x128xf32>
    %160 = arith.negf %159 : vector<8x128xf32>
    %161 = math.exp %160 : vector<8x128xf32>
    %cst_51 = arith.constant 1.000000e+00 : f32
    %162 = vector.broadcast %cst_51 : f32 to vector<8x128xf32>
    %163 = arith.addf %162, %161 : vector<8x128xf32>
    %164 = arith.divf %162, %163 : vector<8x128xf32>
    %c0_52 = arith.constant 0 : index
    %c0_53 = arith.constant 0 : index
    %165 = vector.load %arg6[%c0_52, %c0_53] : memref<8x128xf32, #tpu.memory_space<vmem>>, vector<8x128xf32>
    tpu.vector_store %arg6[%c0_52, %c0_53], %164 {strides = array<i32>} : memref<8x128xf32, #tpu.memory_space<vmem>>, vector<8x128xf32>,
    return
  }
}

</mosaic_0001>

<llo_original>
// kernel: tpu_custom_call.1
$region0: #{tpu_custom_call.1}
  #allocation0 [shape = 'u32[]', space=smem, size = 0x4, offset = 0x4, fixed_abs, tag = 'smem constant byte address 0x4 - core index']
  #allocation1 [shape = 'u32[144,128]{1,0:T(1,128)}', space=vmem, size = 0x12000, scoped, tag = 'internal scratch']
  %s0 = inlined_call_operand.vmem [shape: s32[8,2], index: 0, kind: input, shape index: {}]
  %s1 = inlined_call_operand.hbm [shape: f32[16,96], index: 1, kind: input, shape index: {}]
  %s2 = inlined_call_operand.vmem [shape: f32[16,96], index: 2, kind: input, shape index: {}]
  %s3 = inlined_call_operand.hbm [shape: f32[2,96,128], index: 3, kind: input, shape index: {}]
  %s4 = inlined_call_operand.hbm [shape: f32[127,128], index: 4, kind: input, shape index: {}]
  %s5 = inlined_call_operand.hbm [shape: f32[32,128], index: 5, kind: output, shape index: {0}]
  %s6 = inlined_call_operand.hbm [shape: f32[8,128], index: 6, kind: output, shape index: {1}]
  %7 = xla_tuple %s5, %s6
  %s8 = sld [smem:[#allocation0]]
  $region50: #{tpu_custom_call.1} parent=0
    _
  %s10 = ssub.s32 1, %s8
  %s11 = scalar_select 0, %s10, %s8
  $region1: #{tpu_custom_call.1} parent=0
    #allocation2 [shape = 'u8[8192]{0}', space=vmem, size = 0x2000, scoped, tag = 'input window, operand 1, single buffered']
    #allocation3 [shape = 's32[1]{0}', space=sflag, size = 0x4, scoped, tag = 'scoped memory for tpu_custom_call.1']
    #allocation4 [shape = 's32[1]{0}', space=sflag, size = 0x4, scoped, tag = 'scoped memory for tpu_custom_call.1']
    #allocation5 [shape = 'u8[98304]{0}', space=vmem, size = 0x18000, scoped, tag = 'input window, operand 3, single buffered']
    #allocation6 [shape = 's32[1]{0}', space=sflag, size = 0x4, scoped, tag = 'scoped memory for tpu_custom_call.1']
    #allocation7 [shape = 'u8[65536]{0}', space=vmem, size = 0x10000, scoped, tag = 'input window, operand 4, single buffered']
    #allocation8 [shape = 'u8[16384]{0}', space=vmem, size = 0x4000, scoped, tag = 'output window, operand 0, single buffered']
    #allocation9 [shape = 'u8[4096]{0}', space=vmem, size = 0x1000, scoped, tag = 'output window, operand 1, single buffered']
    #allocation10 [shape = 's32[1]{0}', space=sflag, size = 0x4, scoped, tag = 'scoped memory for tpu_custom_call.1']
    %12 = vsyncpa [#allocation3], 0
    %13 = vsyncpa [#allocation6], 0
    %14 = vsyncpa [#allocation4], 0
    %15 = vsyncpa [#allocation10], 0
    // Predicated region
    $region2: #{tpu_custom_call.1} parent=1 // pred_check
      _
    $region3: #{tpu_custom_call.1} parent=1 // pred_check_branch
      %17 = sbr.rel (0) target = $region5
    $region4: #{tpu_custom_call.1} parent=1 // pred_region
      _
    $region5: #{tpu_custom_call.1} parent=1 // pred_fallthru
      _
    // Predicated region
    $region6: #{tpu_custom_call.1} parent=1 // pred_check
      _
    $region7: #{tpu_custom_call.1} parent=1 // pred_check_branch
      %19 = sbr.rel (0) target = $region9
    $region8: #{tpu_custom_call.1} parent=1 // pred_region
      %s21 = ssub.s32 256, 256
      %22 = vsyncadd [#allocation3], %s21
      %s23 = sshll.u32 [#allocation2], 4
      %s24 = int_to_ptr.vmem [resolvable:$true] %s23
      %29 = dma.hbm_to_vmem [thread:$0]  %s1, 256, %s24, [#allocation3], 128, 128, 8
    $region9: #{tpu_custom_call.1} parent=1 // pred_fallthru
      _
    // Predicated region
    $region10: #{tpu_custom_call.1} parent=1 // pred_check
      _
    $region11: #{tpu_custom_call.1} parent=1 // pred_check_branch
      %31 = sbr.rel (0) target = $region13
    $region12: #{tpu_custom_call.1} parent=1 // pred_region
      _
    $region13: #{tpu_custom_call.1} parent=1 // pred_fallthru
      _
    // Predicated region
    $region14: #{tpu_custom_call.1} parent=1 // pred_check
      _
    $region15: #{tpu_custom_call.1} parent=1 // pred_check_branch
      %33 = sbr.rel (0) target = $region17
    $region16: #{tpu_custom_call.1} parent=1 // pred_region
      %s35 = ssub.s32 3072, 3072
      %36 = vsyncadd [#allocation6], %s35
      %s37 = sshll.u32 [#allocation5], 4
      %s38 = int_to_ptr.vmem [resolvable:$true] %s37
      %43 = dma.hbm_to_vmem [thread:$0]  %s3, 3072, %s38, [#allocation6], 128, 128, 8
    $region17: #{tpu_custom_call.1} parent=1 // pred_fallthru
      _
    // Predicated region
    $region18: #{tpu_custom_call.1} parent=1 // pred_check
      _
    $region19: #{tpu_custom_call.1} parent=1 // pred_check_branch
      %45 = sbr.rel (0) target = $region21
    $region20: #{tpu_custom_call.1} parent=1 // pred_region
      %s47 = ssub.s32 2048, 2048
      %48 = vsyncadd [#allocation6], %s47
      %s49 = sshll.u32 [#allocation7], 4
      %s50 = int_to_ptr.vmem [resolvable:$true] %s49
      %55 = dma.hbm_to_vmem [thread:$0]  %s4, 2048, %s50, [#allocation6], 128, 128, 8
    $region21: #{tpu_custom_call.1} parent=1 // pred_fallthru
      _
    // Predicated region
    $region22: #{tpu_custom_call.1} parent=1 // pred_check
      _
    $region23: #{tpu_custom_call.1} parent=1 // pred_check_branch
      %57 = sbr.rel (0) target = $region25
    $region24: #{tpu_custom_call.1} parent=1 // pred_region
      %58 = dma.done [#allocation3], 256
    $region25: #{tpu_custom_call.1} parent=1 // pred_fallthru
      _
    // Predicated region
    $region26: #{tpu_custom_call.1} parent=1 // pred_check
      _
    $region27: #{tpu_custom_call.1} parent=1 // pred_check_branch
      %60 = sbr.rel (0) target = $region29
    $region28: #{tpu_custom_call.1} parent=1 // pred_region
      %61 = dma.done [#allocation6], 3072
    $region29: #{tpu_custom_call.1} parent=1 // pred_fallthru
      _
    // Predicated region
    $region30: #{tpu_custom_call.1} parent=1 // pred_check
      _
    $region31: #{tpu_custom_call.1} parent=1 // pred_check_branch
      %63 = sbr.rel (0) target = $region33
    $region32: #{tpu_custom_call.1} parent=1 // pred_region
      %64 = dma.done [#allocation6], 2048
    $region33: #{tpu_custom_call.1} parent=1 // pred_fallthru
      _
    %v65 = vld [vmem:[%s0] sm:$0xff]
    %v66 = vlaneseq
    %v67 = vand.u32 %v66, 127
    %68 = vset.pattern.permute.xlu0 0
    %69 = vperm.xlu0 %68, %v65
    %v70 = vpop.permute.xlu0 %69
    %vm71 = vcmp.eq.s32.totalorder %v67, %v70
    %v72 = vsel %vm71, 1, 0
    %v73 = vcvt.s32.f32 %v72
    %74 = vset.pattern.permute.xlu0 1
    %75 = vperm.xlu0 %74, %v65
    %v76 = vpop.permute.xlu0 %75
    %vm77 = vcmp.eq.s32.totalorder %v67, %v76
    %v78 = vsel %vm77, 1, 0
    %v79 = vcvt.s32.f32 %v78
    %v80 = vld [vmem:[#allocation2] sm:$0xff]
    %v81 = vld [vmem:[#allocation2 + $0x8] sm:$0xff]
    %v82 = vld [vmem:[#allocation5] sm:$0xff]
    %v83 = vld [vmem:[#allocation5 + $0x8] sm:$0xff]
    %v84 = vld [vmem:[#allocation5 + $0x10] sm:$0xff]
    %v85 = vld [vmem:[#allocation5 + $0x18] sm:$0xff]
    %v86 = vld [vmem:[#allocation5 + $0x20] sm:$0xff]
    %v87 = vld [vmem:[#allocation5 + $0x28] sm:$0xff]
    %v88 = vld [vmem:[#allocation5 + $0x30] sm:$0xff]
    %v89 = vld [vmem:[#allocation5 + $0x38] sm:$0xff]
    %v90 = vld [vmem:[#allocation5 + $0x40] sm:$0xff]
    %v91 = vld [vmem:[#allocation5 + $0x48] sm:$0xff]
    %v92 = vld [vmem:[#allocation5 + $0x50] sm:$0xff]
    %v93 = vld [vmem:[#allocation5 + $0x58] sm:$0xff]
    %vm94 = vcmask 785408
    %v96 = vsel %vm94, %v80, 0
    %v99 = vsel %vm94, %v81, 0
    %101 = vmatprep.subr.mxu0 0.0
    %102 = vmatpush1.msra.mxu0 %v82
    %103 = vmatprep.subr.mxu0 0.0
    %104 = vmatpush1.msra.mxu0 %v83
    %105 = vmatprep.subr.mxu0 0.0
    %106 = vmatpush1.msra.mxu0 %v84
    %107 = vmatprep.subr.mxu0 0.0
    %108 = vmatpush1.msra.mxu0 %v85
    %109 = vmatprep.subr.mxu0 0.0
    %110 = vmatpush1.msra.mxu0 %v86
    %111 = vmatprep.subr.mxu0 0.0
    %112 = vmatpush1.msra.mxu0 %v87
    %113 = vmatprep.subr.mxu0 0.0
    %114 = vmatpush1.msra.mxu0 %v88
    %115 = vmatprep.subr.mxu0 0.0
    %116 = vmatpush1.msra.mxu0 %v89
    %117 = vmatprep.subr.mxu0 0.0
    %118 = vmatpush1.msra.mxu0 %v90
    %119 = vmatprep.subr.mxu0 0.0
    %120 = vmatpush1.msra.mxu0 %v91
    %121 = vmatprep.subr.mxu0 0.0
    %122 = vmatpush1.msra.mxu0 %v92
    %123 = vmatprep.subr.mxu0 0.0
    %124 = vmatpush1.msra.mxu0 %v93
    %125 = vmatprep.subr.mxu0 0.0
    %126 = vmatpush1.msra.mxu0 0.0
    %127 = vmatprep.subr.mxu0 0.0
    %128 = vmatpush1.msra.mxu0 0.0
    %129 = vmatprep.subr.mxu0 0.0
    %130 = vmatpush1.msra.mxu0 0.0
    %131 = vmatprep.subr.mxu0 0.0
    %132 = vmatpush1.msra.mxu0 0.0
    %133 = vmatprep.subr.mxu0 0.0
    %134 = vmatpush1.msra.mxu0 0.0
    %135 = vmatprep.subr.mxu0 0.0
    %136 = vmatpush1.msra.mxu0 0.0
    %137 = vmatprep.subr.mxu0 0.0
    %138 = vmatpush1.msra.mxu0 0.0
    %139 = vmatprep.subr.mxu0 0.0
    %140 = vmatpush1.msra.mxu0 0.0
    %141 = vmatprep.subr.mxu0 0.0
    %142 = vmatpush1.msra.mxu0 0.0
    %143 = vmatprep.subr.mxu0 0.0
    %144 = vmatpush1.msra.mxu0 0.0
    %145 = vmatprep.subr.mxu0 0.0
    %146 = vmatpush1.msra.mxu0 0.0
    %147 = vmatprep.subr.mxu0 0.0
    %148 = vmatpush1.msra.mxu0 0.0
    %149 = vmatprep.subr.mxu0 0.0
    %150 = vmatpush1.msra.mxu0 0.0
    %151 = vmatprep.subr.mxu0 0.0
    %152 = vmatpush1.msra.mxu0 0.0
    %153 = vmatprep.subr.mxu0 0.0
    %154 = vmatpush1.msra.mxu0 0.0
    %155 = vmatprep.subr.mxu0 0.0
    %156 = vmatpush1.msra.mxu0 0.0
    %157 = vmatprep.subr.mxu0 0.0
    %158 = vmatpush1.msra.mxu0 0.0
    %159 = vmatprep.subr.mxu0 0.0
    %160 = vmatpush1.msra.mxu0 0.0
    %161 = vmatprep.subr.mxu0 0.0
    %162 = vmatpush1.msra.mxu0 0.0
    %163 = vmatprep.subr.mxu0 0.0
    %164 = vmatpush1.msra.mxu0 0.0
    %165 = vmatprep.mubr.f32.mxu0 0.0
    %166 = vmatmul.mubr.f32.gmra.mrb[0].mxu0 %v96
    %v167 = vpop.f32.mrb[0].mxu0
    %v168 = vadd.f32 0.0, %v167
    %v169 = vpop.f32.mrb[0].mxu0
    %170 = vmatprep.mubr.f32.mxu0 0.0
    %171 = vmatmul.mubr.f32.gmra.mrb[0].mxu0 %v99
    %v172 = vpop.f32.mrb[0].mxu0
    %v173 = vadd.f32 0.0, %v172
    %v174 = vpop.f32.mrb[0].mxu0
    %175 = vdwg.mxu0
    %v176 = vld [vmem:[%s2] sm:$0xff]
    %v177 = vld [vmem:[%s2 + $0x8] sm:$0xff]
    %s178 = scalar_lea.vmem [#allocation5], 96
    %v179 = vld [vmem:[%s178] sm:$0xff]
    %v180 = vld [vmem:[%s178 + $0x8] sm:$0xff]
    %v181 = vld [vmem:[%s178 + $0x10] sm:$0xff]
    %v182 = vld [vmem:[%s178 + $0x18] sm:$0xff]
    %v183 = vld [vmem:[%s178 + $0x20] sm:$0xff]
    %v184 = vld [vmem:[%s178 + $0x28] sm:$0xff]
    %v185 = vld [vmem:[%s178 + $0x30] sm:$0xff]
    %v186 = vld [vmem:[%s178 + $0x38] sm:$0xff]
    %v187 = vld [vmem:[%s178 + $0x40] sm:$0xff]
    %v188 = vld [vmem:[%s178 + $0x48] sm:$0xff]
    %v189 = vld [vmem:[%s178 + $0x50] sm:$0xff]
    %v190 = vld [vmem:[%s178 + $0x58] sm:$0xff]
    %v192 = vsel %vm94, %v176, 0
    %v195 = vsel %vm94, %v177, 0
    %197 = vmatprep.subr.mxu0 0.0
    %198 = vmatpush1.msra.mxu0 %v179
    %199 = vmatprep.subr.mxu0 0.0
    %200 = vmatpush1.msra.mxu0 %v180
    %201 = vmatprep.subr.mxu0 0.0
    %202 = vmatpush1.msra.mxu0 %v181
    %203 = vmatprep.subr.mxu0 0.0
    %204 = vmatpush1.msra.mxu0 %v182
    %205 = vmatprep.subr.mxu0 0.0
    %206 = vmatpush1.msra.mxu0 %v183
    %207 = vmatprep.subr.mxu0 0.0
    %208 = vmatpush1.msra.mxu0 %v184
    %209 = vmatprep.subr.mxu0 0.0
    %210 = vmatpush1.msra.mxu0 %v185
    %211 = vmatprep.subr.mxu0 0.0
    %212 = vmatpush1.msra.mxu0 %v186
    %213 = vmatprep.subr.mxu0 0.0
    %214 = vmatpush1.msra.mxu0 %v187
    %215 = vmatprep.subr.mxu0 0.0
    %216 = vmatpush1.msra.mxu0 %v188
    %217 = vmatprep.subr.mxu0 0.0
    %218 = vmatpush1.msra.mxu0 %v189
    %219 = vmatprep.subr.mxu0 0.0
    %220 = vmatpush1.msra.mxu0 %v190
    %221 = vmatprep.subr.mxu0 0.0
    %222 = vmatpush1.msra.mxu0 0.0
    %223 = vmatprep.subr.mxu0 0.0
    %224 = vmatpush1.msra.mxu0 0.0
    %225 = vmatprep.subr.mxu0 0.0
    %226 = vmatpush1.msra.mxu0 0.0
    %227 = vmatprep.subr.mxu0 0.0
    %228 = vmatpush1.msra.mxu0 0.0
    %229 = vmatprep.subr.mxu0 0.0
    %230 = vmatpush1.msra.mxu0 0.0
    %231 = vmatprep.subr.mxu0 0.0
    %232 = vmatpush1.msra.mxu0 0.0
    %233 = vmatprep.subr.mxu0 0.0
    %234 = vmatpush1.msra.mxu0 0.0
    %235 = vmatprep.subr.mxu0 0.0
    %236 = vmatpush1.msra.mxu0 0.0
    %237 = vmatprep.subr.mxu0 0.0
    %238 = vmatpush1.msra.mxu0 0.0
    %239 = vmatprep.subr.mxu0 0.0
    %240 = vmatpush1.msra.mxu0 0.0
    %241 = vmatprep.subr.mxu0 0.0
    %242 = vmatpush1.msra.mxu0 0.0
    %243 = vmatprep.subr.mxu0 0.0
    %244 = vmatpush1.msra.mxu0 0.0
    %245 = vmatprep.subr.mxu0 0.0
    %246 = vmatpush1.msra.mxu0 0.0
    %247 = vmatprep.subr.mxu0 0.0
    %248 = vmatpush1.msra.mxu0 0.0
    %249 = vmatprep.subr.mxu0 0.0
    %250 = vmatpush1.msra.mxu0 0.0
    %251 = vmatprep.subr.mxu0 0.0
    %252 = vmatpush1.msra.mxu0 0.0
    %253 = vmatprep.subr.mxu0 0.0
    %254 = vmatpush1.msra.mxu0 0.0
    %255 = vmatprep.subr.mxu0 0.0
    %256 = vmatpush1.msra.mxu0 0.0
    %257 = vmatprep.subr.mxu0 0.0
    %258 = vmatpush1.msra.mxu0 0.0
    %259 = vmatprep.subr.mxu0 0.0
    %260 = vmatpush1.msra.mxu0 0.0
    %261 = vmatprep.mubr.f32.mxu0 0.0
    %262 = vmatmul.mubr.f32.gmra.mrb[0].mxu0 %v192
    %v263 = vpop.f32.mrb[0].mxu0
    %v264 = vadd.f32 0.0, %v263
    %v265 = vpop.f32.mrb[0].mxu0
    %266 = vmatprep.mubr.f32.mxu0 0.0
    %267 = vmatmul.mubr.f32.gmra.mrb[0].mxu0 %v195
    %v268 = vpop.f32.mrb[0].mxu0
    %v269 = vadd.f32 0.0, %v268
    %v270 = vpop.f32.mrb[0].mxu0
    %271 = vdwg.mxu0
    %272 = vst [vmem:[#allocation8] sm:$0xff] %v168
    %273 = vst [vmem:[#allocation8 + $0x8] sm:$0xff] %v173
    %274 = vst [vmem:[#allocation8 + $0x10] sm:$0xff] %v264
    %275 = vst [vmem:[#allocation8 + $0x18] sm:$0xff] %v269
    %vm276 = vcmask 130048
    %v278 = vsel %vm276, %v73, 0
    %280 = vmatprep.subr.mxu0 0.0
    %281 = vmatpush1.msra.mxu0 %v168
    %282 = vmatprep.subr.mxu0 0.0
    %283 = vmatpush1.msra.mxu0 %v173
    %284 = vmatprep.subr.mxu0 0.0
    %285 = vmatpush1.msra.mxu0 0.0
    %286 = vmatprep.subr.mxu0 0.0
    %287 = vmatpush1.msra.mxu0 0.0
    %288 = vmatprep.subr.mxu0 0.0
    %289 = vmatpush1.msra.mxu0 0.0
    %290 = vmatprep.subr.mxu0 0.0
    %291 = vmatpush1.msra.mxu0 0.0
    %292 = vmatprep.subr.mxu0 0.0
    %293 = vmatpush1.msra.mxu0 0.0
    %294 = vmatprep.subr.mxu0 0.0
    %295 = vmatpush1.msra.mxu0 0.0
    %296 = vmatprep.subr.mxu0 0.0
    %297 = vmatpush1.msra.mxu0 0.0
    %298 = vmatprep.subr.mxu0 0.0
    %299 = vmatpush1.msra.mxu0 0.0
    %300 = vmatprep.subr.mxu0 0.0
    %301 = vmatpush1.msra.mxu0 0.0
    %302 = vmatprep.subr.mxu0 0.0
    %303 = vmatpush1.msra.mxu0 0.0
    %304 = vmatprep.subr.mxu0 0.0
    %305 = vmatpush1.msra.mxu0 0.0
    %306 = vmatprep.subr.mxu0 0.0
    %307 = vmatpush1.msra.mxu0 0.0
    %308 = vmatprep.subr.mxu0 0.0
    %309 = vmatpush1.msra.mxu0 0.0
    %310 = vmatprep.subr.mxu0 0.0
    %311 = vmatpush1.msra.mxu0 0.0
    %312 = vmatprep.subr.mxu0 0.0
    %313 = vmatpush1.msra.mxu0 0.0
    %314 = vmatprep.subr.mxu0 0.0
    %315 = vmatpush1.msra.mxu0 0.0
    %316 = vmatprep.subr.mxu0 0.0
    %317 = vmatpush1.msra.mxu0 0.0
    %318 = vmatprep.subr.mxu0 0.0
    %319 = vmatpush1.msra.mxu0 0.0
    %320 = vmatprep.subr.mxu0 0.0
    %321 = vmatpush1.msra.mxu0 0.0
    %322 = vmatprep.subr.mxu0 0.0
    %323 = vmatpush1.msra.mxu0 0.0
    %324 = vmatprep.subr.mxu0 0.0
    %325 = vmatpush1.msra.mxu0 0.0
    %326 = vmatprep.subr.mxu0 0.0
    %327 = vmatpush1.msra.mxu0 0.0
    %328 = vmatprep.subr.mxu0 0.0
    %329 = vmatpush1.msra.mxu0 0.0
    %330 = vmatprep.subr.mxu0 0.0
    %331 = vmatpush1.msra.mxu0 0.0
    %332 = vmatprep.subr.mxu0 0.0
    %333 = vmatpush1.msra.mxu0 0.0
    %334 = vmatprep.subr.mxu0 0.0
    %335 = vmatpush1.msra.mxu0 0.0
    %336 = vmatprep.subr.mxu0 0.0
    %337 = vmatpush1.msra.mxu0 0.0
    %338 = vmatprep.subr.mxu0 0.0
    %339 = vmatpush1.msra.mxu0 0.0
    %340 = vmatprep.subr.mxu0 0.0
    %341 = vmatpush1.msra.mxu0 0.0
    %342 = vmatprep.subr.mxu0 0.0
    %343 = vmatpush1.msra.mxu0 0.0
    %344 = vmatprep.mubr.f32.mxu0 0.0
    %345 = vmatmul.mubr.f32.gmra.mrb[0].mxu0 %v278
    %v346 = vpop.f32.mrb[0].mxu0
    %v347 = vadd.f32 0.0, %v346
    %v348 = vpop.f32.mrb[0].mxu0
    %349 = vdwg.mxu0
    %v351 = vsel %vm276, %v79, 0
    %353 = vmatprep.subr.mxu0 0.0
    %354 = vmatpush1.msra.mxu0 %v264
    %355 = vmatprep.subr.mxu0 0.0
    %356 = vmatpush1.msra.mxu0 %v269
    %357 = vmatprep.subr.mxu0 0.0
    %358 = vmatpush1.msra.mxu0 0.0
    %359 = vmatprep.subr.mxu0 0.0
    %360 = vmatpush1.msra.mxu0 0.0
    %361 = vmatprep.subr.mxu0 0.0
    %362 = vmatpush1.msra.mxu0 0.0
    %363 = vmatprep.subr.mxu0 0.0
    %364 = vmatpush1.msra.mxu0 0.0
    %365 = vmatprep.subr.mxu0 0.0
    %366 = vmatpush1.msra.mxu0 0.0
    %367 = vmatprep.subr.mxu0 0.0
    %368 = vmatpush1.msra.mxu0 0.0
    %369 = vmatprep.subr.mxu0 0.0
    %370 = vmatpush1.msra.mxu0 0.0
    %371 = vmatprep.subr.mxu0 0.0
    %372 = vmatpush1.msra.mxu0 0.0
    %373 = vmatprep.subr.mxu0 0.0
    %374 = vmatpush1.msra.mxu0 0.0
    %375 = vmatprep.subr.mxu0 0.0
    %376 = vmatpush1.msra.mxu0 0.0
    %377 = vmatprep.subr.mxu0 0.0
    %378 = vmatpush1.msra.mxu0 0.0
    %379 = vmatprep.subr.mxu0 0.0
    %380 = vmatpush1.msra.mxu0 0.0
    %381 = vmatprep.subr.mxu0 0.0
    %382 = vmatpush1.msra.mxu0 0.0
    %383 = vmatprep.subr.mxu0 0.0
    %384 = vmatpush1.msra.mxu0 0.0
    %385 = vmatprep.subr.mxu0 0.0
    %386 = vmatpush1.msra.mxu0 0.0
    %387 = vmatprep.subr.mxu0 0.0
    %388 = vmatpush1.msra.mxu0 0.0
    %389 = vmatprep.subr.mxu0 0.0
    %390 = vmatpush1.msra.mxu0 0.0
    %391 = vmatprep.subr.mxu0 0.0
    %392 = vmatpush1.msra.mxu0 0.0
    %393 = vmatprep.subr.mxu0 0.0
    %394 = vmatpush1.msra.mxu0 0.0
    %395 = vmatprep.subr.mxu0 0.0
    %396 = vmatpush1.msra.mxu0 0.0
    %397 = vmatprep.subr.mxu0 0.0
    %398 = vmatpush1.msra.mxu0 0.0
    %399 = vmatprep.subr.mxu0 0.0
    %400 = vmatpush1.msra.mxu0 0.0
    %401 = vmatprep.subr.mxu0 0.0
    %402 = vmatpush1.msra.mxu0 0.0
    %403 = vmatprep.subr.mxu0 0.0
    %404 = vmatpush1.msra.mxu0 0.0
    %405 = vmatprep.subr.mxu0 0.0
    %406 = vmatpush1.msra.mxu0 0.0
    %407 = vmatprep.subr.mxu0 0.0
    %408 = vmatpush1.msra.mxu0 0.0
    %409 = vmatprep.subr.mxu0 0.0
    %410 = vmatpush1.msra.mxu0 0.0
    %411 = vmatprep.subr.mxu0 0.0
    %412 = vmatpush1.msra.mxu0 0.0
    %413 = vmatprep.subr.mxu0 0.0
    %414 = vmatpush1.msra.mxu0 0.0
    %415 = vmatprep.subr.mxu0 0.0
    %416 = vmatpush1.msra.mxu0 0.0
    %417 = vmatprep.mubr.f32.mxu0 0.0
    %418 = vmatmul.mubr.f32.gmra.mrb[0].mxu0 %v351
    %v419 = vpop.f32.mrb[0].mxu0
    %v420 = vadd.f32 0.0, %v419
    %v421 = vpop.f32.mrb[0].mxu0
    %422 = vdwg.mxu0
    %v423 = vld [vmem:[#allocation7 + $0x76] sm:$0x1]
    %v424 = vlaneseq
    %v425 = vshrl.u32 %v424, 7
    %v426 = vsub.s32 0, %v425
    %v427 = vrot.slane %v423, %v426
    %429 = vrot.lane.b32.xlu0 %v427, 96
    %v430 = vpop.permute.xlu0 %429
    %v432 = vadd.f32 %v347, %v430
    %vm433 = vcmp.ge.f32.partialorder %v432, 0.0
    %v434 = vmul.f32 %v432, 0.01
    %v435 = vsel %vm433, %v432, %v434
    %v436 = vld [vmem:[#allocation7 + $0x70] sm:$0x1]
    %v437 = vlaneseq
    %v438 = vshrl.u32 %v437, 7
    %v439 = vsub.s32 0, %v438
    %v440 = vrot.slane %v436, %v439
    %442 = vrot.lane.b32.xlu0 %v440, 96
    %v443 = vpop.permute.xlu0 %442
    %v445 = vmul.f32 %v435, %v443
    %v446 = vld [vmem:[#allocation7 + $0x71] sm:$0x1]
    %v447 = vlaneseq
    %v448 = vshrl.u32 %v447, 7
    %v449 = vsub.s32 0, %v448
    %v450 = vrot.slane %v446, %v449
    %452 = vrot.lane.b32.xlu0 %v450, 96
    %v453 = vpop.permute.xlu0 %452
    %v455 = vadd.f32 %v445, %v453
    %vm456 = vcmask 1048320
    %v457 = vsel %vm456, %v455, -inf
    %458 = vmax.xlane.f32.xlu0 %v457
    %v459 = vpop.xlane.xlu0 %458
    %v460 = vsub.f32 %v455, %v459
    %v461 = vmul.f32 %v460, 1.442695
    %v462 = vpow.pop %v461
    %464 = vrot.lane.b32.xlu0 %v462, 32
    %v465 = vpop.permute.xlu0 %464
    %vm467 = vcmask 261120
    %v468 = vsel %vm467, %v465, 0.0
    %469 = vadd.xlane.f32.xlu0 %v468
    %v470 = vpop.xlane.xlu0 %469
    %v471 = vrcp.pop %v470
    %v472 = vmul.f32 %v462, %v471
    %v473 = vld [vmem:[#allocation7 + $0x79] sm:$0x7]
    %v474 = vlaneseq
    %v475 = vshrl.u32 %v474, 7
    %v476 = vsub.s32 0, %v475
    %v477 = vrot.slane %v473, %v476
    %v478 = vmul.f32 %v477, %v347
    %480 = vrot.lane.b32.xlu0 %v347, 96
    %v481 = vpop.permute.xlu0 %480
    %v483 = vadd.f32 %v347, %v481
    %v484 = vlaneseq
    %v485 = vshrl.u32 %v484, 7
    %v486 = vsub.s32 1, %v485
    %v487 = vrot.slane %v473, %v486
    %v488 = vmul.f32 %v487, %v481
    %v489 = vadd.f32 %v478, %v488
    %490 = vrot.lane.b32.xlu0 %v347, 64
    %v491 = vpop.permute.xlu0 %490
    %v493 = vadd.f32 %v483, %v491
    %v494 = vlaneseq
    %v495 = vshrl.u32 %v494, 7
    %v496 = vsub.s32 2, %v495
    %v497 = vrot.slane %v473, %v496
    %v498 = vmul.f32 %v497, %v491
    %v499 = vadd.f32 %v489, %v498
    %501 = vrot.lane.b32.xlu0 %v472, 32
    %v502 = vpop.permute.xlu0 %501
    %v504 = vmul.f32 %v493, %v502
    %v505 = vadd.f32 %v504, %v499
    %v506 = vmul.f32 %v505, 0.5
    %v507 = vld [vmem:[#allocation7 + $0x77] sm:$0x1]
    %v508 = vlaneseq
    %v509 = vshrl.u32 %v508, 7
    %v510 = vsub.s32 0, %v509
    %v511 = vrot.slane %v507, %v510
    %513 = vrot.lane.b32.xlu0 %v511, 96
    %v514 = vpop.permute.xlu0 %513
    %v516 = vadd.f32 %v420, %v514
    %vm517 = vcmp.ge.f32.partialorder %v516, 0.0
    %v518 = vmul.f32 %v516, 0.01
    %v519 = vsel %vm517, %v516, %v518
    %v520 = vld [vmem:[#allocation7 + $0x72] sm:$0x1]
    %v521 = vlaneseq
    %v522 = vshrl.u32 %v521, 7
    %v523 = vsub.s32 0, %v522
    %v524 = vrot.slane %v520, %v523
    %526 = vrot.lane.b32.xlu0 %v524, 96
    %v527 = vpop.permute.xlu0 %526
    %v529 = vmul.f32 %v519, %v527
    %v530 = vld [vmem:[#allocation7 + $0x73] sm:$0x1]
    %v531 = vlaneseq
    %v532 = vshrl.u32 %v531, 7
    %v533 = vsub.s32 0, %v532
    %v534 = vrot.slane %v530, %v533
    %536 = vrot.lane.b32.xlu0 %v534, 96
    %v537 = vpop.permute.xlu0 %536
    %v539 = vadd.f32 %v529, %v537
    %v540 = vsel %vm456, %v539, -inf
    %541 = vmax.xlane.f32.xlu0 %v540
    %v542 = vpop.xlane.xlu0 %541
    %v543 = vsub.f32 %v539, %v542
    %v544 = vmul.f32 %v543, 1.442695
    %v545 = vpow.pop %v544
    %547 = vrot.lane.b32.xlu0 %v545, 32
    %v548 = vpop.permute.xlu0 %547
    %v550 = vsel %vm467, %v548, 0.0
    %551 = vadd.xlane.f32.xlu0 %v550
    %v552 = vpop.xlane.xlu0 %551
    %v553 = vrcp.pop %v552
    %v554 = vmul.f32 %v545, %v553
    %v555 = vld [vmem:[#allocation7 + $0x7c] sm:$0x7]
    %v556 = vlaneseq
    %v557 = vshrl.u32 %v556, 7
    %v558 = vsub.s32 0, %v557
    %v559 = vrot.slane %v555, %v558
    %v560 = vmul.f32 %v559, %v420
    %562 = vrot.lane.b32.xlu0 %v420, 96
    %v563 = vpop.permute.xlu0 %562
    %v565 = vadd.f32 %v420, %v563
    %v566 = vlaneseq
    %v567 = vshrl.u32 %v566, 7
    %v568 = vsub.s32 1, %v567
    %v569 = vrot.slane %v555, %v568
    %v570 = vmul.f32 %v569, %v563
    %v571 = vadd.f32 %v560, %v570
    %572 = vrot.lane.b32.xlu0 %v420, 64
    %v573 = vpop.permute.xlu0 %572
    %v575 = vadd.f32 %v565, %v573
    %v576 = vlaneseq
    %v577 = vshrl.u32 %v576, 7
    %v578 = vsub.s32 2, %v577
    %v579 = vrot.slane %v555, %v578
    %v580 = vmul.f32 %v579, %v573
    %v581 = vadd.f32 %v571, %v580
    %583 = vrot.lane.b32.xlu0 %v554, 32
    %v584 = vpop.permute.xlu0 %583
    %v586 = vmul.f32 %v575, %v584
    %v587 = vadd.f32 %v586, %v581
    %v588 = vmul.f32 %v587, 0.5
    %v589 = vld [vmem:[#allocation7] sm:$0xff]
    %v590 = vld [vmem:[#allocation7 + $0x8] sm:$0xff]
    %v591 = vld [vmem:[#allocation7 + $0x10] sm:$0xff]
    %v592 = vld [vmem:[#allocation7 + $0x18] sm:$0xff]
    %v593 = vld [vmem:[#allocation7 + $0x20] sm:$0xff]
    %v594 = vld [vmem:[#allocation7 + $0x28] sm:$0xff]
    %v595 = vld [vmem:[#allocation7 + $0x30] sm:$0xff]
    %v596 = vld [vmem:[#allocation7 + $0x38] sm:$0xff]
    %v598 = vsel %vm467, %v588, 0
    %600 = vmatprep.subr.mxu0 0.0
    %601 = vmatpush1.msra.mxu0 %v593
    %602 = vmatprep.subr.mxu0 0.0
    %603 = vmatpush1.msra.mxu0 %v594
    %604 = vmatprep.subr.mxu0 0.0
    %605 = vmatpush1.msra.mxu0 %v595
    %606 = vmatprep.subr.mxu0 0.0
    %607 = vmatpush1.msra.mxu0 %v596
    %608 = vmatprep.subr.mxu0 0.0
    %609 = vmatpush1.msra.mxu0 0.0
    %610 = vmatprep.subr.mxu0 0.0
    %611 = vmatpush1.msra.mxu0 0.0
    %612 = vmatprep.subr.mxu0 0.0
    %613 = vmatpush1.msra.mxu0 0.0
    %614 = vmatprep.subr.mxu0 0.0
    %615 = vmatpush1.msra.mxu0 0.0
    %616 = vmatprep.subr.mxu0 0.0
    %617 = vmatpush1.msra.mxu0 0.0
    %618 = vmatprep.subr.mxu0 0.0
    %619 = vmatpush1.msra.mxu0 0.0
    %620 = vmatprep.subr.mxu0 0.0
    %621 = vmatpush1.msra.mxu0 0.0
    %622 = vmatprep.subr.mxu0 0.0
    %623 = vmatpush1.msra.mxu0 0.0
    %624 = vmatprep.subr.mxu0 0.0
    %625 = vmatpush1.msra.mxu0 0.0
    %626 = vmatprep.subr.mxu0 0.0
    %627 = vmatpush1.msra.mxu0 0.0
    %628 = vmatprep.subr.mxu0 0.0
    %629 = vmatpush1.msra.mxu0 0.0
    %630 = vmatprep.subr.mxu0 0.0
    %631 = vmatpush1.msra.mxu0 0.0
    %632 = vmatprep.subr.mxu0 0.0
    %633 = vmatpush1.msra.mxu0 0.0
    %634 = vmatprep.subr.mxu0 0.0
    %635 = vmatpush1.msra.mxu0 0.0
    %636 = vmatprep.subr.mxu0 0.0
    %637 = vmatpush1.msra.mxu0 0.0
    %638 = vmatprep.subr.mxu0 0.0
    %639 = vmatpush1.msra.mxu0 0.0
    %640 = vmatprep.subr.mxu0 0.0
    %641 = vmatpush1.msra.mxu0 0.0
    %642 = vmatprep.subr.mxu0 0.0
    %643 = vmatpush1.msra.mxu0 0.0
    %644 = vmatprep.subr.mxu0 0.0
    %645 = vmatpush1.msra.mxu0 0.0
    %646 = vmatprep.subr.mxu0 0.0
    %647 = vmatpush1.msra.mxu0 0.0
    %648 = vmatprep.subr.mxu0 0.0
    %649 = vmatpush1.msra.mxu0 0.0
    %650 = vmatprep.subr.mxu0 0.0
    %651 = vmatpush1.msra.mxu0 0.0
    %652 = vmatprep.subr.mxu0 0.0
    %653 = vmatpush1.msra.mxu0 0.0
    %654 = vmatprep.subr.mxu0 0.0
    %655 = vmatpush1.msra.mxu0 0.0
    %656 = vmatprep.subr.mxu0 0.0
    %657 = vmatpush1.msra.mxu0 0.0
    %658 = vmatprep.subr.mxu0 0.0
    %659 = vmatpush1.msra.mxu0 0.0
    %660 = vmatprep.subr.mxu0 0.0
    %661 = vmatpush1.msra.mxu0 0.0
    %662 = vmatprep.subr.mxu0 0.0
    %663 = vmatpush1.msra.mxu0 0.0
    %664 = vmatprep.mubr.f32.mxu0 0.0
    %665 = vmatmul.mubr.f32.gmra.mrb[0].mxu0 %v598
    %v666 = vpop.f32.mrb[0].mxu0
    %v667 = vadd.f32 0.0, %v666
    %v668 = vpop.f32.mrb[0].mxu0
    %669 = vdwg.mxu0
    %v671 = vsel %vm467, %v506, 0
    %673 = vmatprep.subr.mxu0 0.0
    %674 = vmatpush1.msra.mxu0 %v589
    %675 = vmatprep.subr.mxu0 0.0
    %676 = vmatpush1.msra.mxu0 %v590
    %677 = vmatprep.subr.mxu0 0.0
    %678 = vmatpush1.msra.mxu0 %v591
    %679 = vmatprep.subr.mxu0 0.0
    %680 = vmatpush1.msra.mxu0 %v592
    %681 = vmatprep.subr.mxu0 0.0
    %682 = vmatpush1.msra.mxu0 0.0
    %683 = vmatprep.subr.mxu0 0.0
    %684 = vmatpush1.msra.mxu0 0.0
    %685 = vmatprep.subr.mxu0 0.0
    %686 = vmatpush1.msra.mxu0 0.0
    %687 = vmatprep.subr.mxu0 0.0
    %688 = vmatpush1.msra.mxu0 0.0
    %689 = vmatprep.subr.mxu0 0.0
    %690 = vmatpush1.msra.mxu0 0.0
    %691 = vmatprep.subr.mxu0 0.0
    %692 = vmatpush1.msra.mxu0 0.0
    %693 = vmatprep.subr.mxu0 0.0
    %694 = vmatpush1.msra.mxu0 0.0
    %695 = vmatprep.subr.mxu0 0.0
    %696 = vmatpush1.msra.mxu0 0.0
    %697 = vmatprep.subr.mxu0 0.0
    %698 = vmatpush1.msra.mxu0 0.0
    %699 = vmatprep.subr.mxu0 0.0
    %700 = vmatpush1.msra.mxu0 0.0
    %701 = vmatprep.subr.mxu0 0.0
    %702 = vmatpush1.msra.mxu0 0.0
    %703 = vmatprep.subr.mxu0 0.0
    %704 = vmatpush1.msra.mxu0 0.0
    %705 = vmatprep.subr.mxu0 0.0
    %706 = vmatpush1.msra.mxu0 0.0
    %707 = vmatprep.subr.mxu0 0.0
    %708 = vmatpush1.msra.mxu0 0.0
    %709 = vmatprep.subr.mxu0 0.0
    %710 = vmatpush1.msra.mxu0 0.0
    %711 = vmatprep.subr.mxu0 0.0
    %712 = vmatpush1.msra.mxu0 0.0
    %713 = vmatprep.subr.mxu0 0.0
    %714 = vmatpush1.msra.mxu0 0.0
    %715 = vmatprep.subr.mxu0 0.0
    %716 = vmatpush1.msra.mxu0 0.0
    %717 = vmatprep.subr.mxu0 0.0
    %718 = vmatpush1.msra.mxu0 0.0
    %719 = vmatprep.subr.mxu0 0.0
    %720 = vmatpush1.msra.mxu0 0.0
    %721 = vmatprep.subr.mxu0 0.0
    %722 = vmatpush1.msra.mxu0 0.0
    %723 = vmatprep.subr.mxu0 0.0
    %724 = vmatpush1.msra.mxu0 0.0
    %725 = vmatprep.subr.mxu0 0.0
    %726 = vmatpush1.msra.mxu0 0.0
    %727 = vmatprep.subr.mxu0 0.0
    %728 = vmatpush1.msra.mxu0 0.0
    %729 = vmatprep.subr.mxu0 0.0
    %730 = vmatpush1.msra.mxu0 0.0
    %731 = vmatprep.subr.mxu0 0.0
    %732 = vmatpush1.msra.mxu0 0.0
    %733 = vmatprep.subr.mxu0 0.0
    %734 = vmatpush1.msra.mxu0 0.0
    %735 = vmatprep.subr.mxu0 0.0
    %736 = vmatpush1.msra.mxu0 0.0
    %737 = vmatprep.mubr.f32.mxu0 0.0
    %738 = vmatmul.mubr.f32.gmra.mrb[0].mxu0 %v671
    %v739 = vpop.f32.mrb[0].mxu0
    %v740 = vadd.f32 %v667, %v739
    %v741 = vpop.f32.mrb[0].mxu0
    %742 = vdwg.mxu0
    %v743 = vld [vmem:[#allocation7 + $0x74] sm:$0x1]
    %v744 = vlaneseq
    %v745 = vshrl.u32 %v744, 7
    %v746 = vsub.s32 0, %v745
    %v747 = vrot.slane %v743, %v746
    %v748 = vadd.f32 %v740, %v747
    %vm749 = vcmp.ge.f32.partialorder %v748, 0.0
    %v750 = vmul.f32 %v748, 0.01
    %v751 = vsel %vm749, %v748, %v750
    %v752 = vld [vmem:[#allocation7 + $0x40] sm:$0xff]
    %v753 = vld [vmem:[#allocation7 + $0x48] sm:$0xff]
    %v754 = vld [vmem:[#allocation7 + $0x50] sm:$0xff]
    %v755 = vld [vmem:[#allocation7 + $0x58] sm:$0xff]
    %v756 = vld [vmem:[#allocation7 + $0x75] sm:$0x1]
    %v757 = vlaneseq
    %v758 = vshrl.u32 %v757, 7
    %v759 = vsub.s32 0, %v758
    %v760 = vrot.slane %v756, %v759
    %v762 = vsel %vm467, %v751, 0
    %764 = vmatprep.subr.mxu0 0.0
    %765 = vmatpush1.msra.mxu0 %v752
    %766 = vmatprep.subr.mxu0 0.0
    %767 = vmatpush1.msra.mxu0 %v753
    %768 = vmatprep.subr.mxu0 0.0
    %769 = vmatpush1.msra.mxu0 %v754
    %770 = vmatprep.subr.mxu0 0.0
    %771 = vmatpush1.msra.mxu0 %v755
    %772 = vmatprep.subr.mxu0 0.0
    %773 = vmatpush1.msra.mxu0 0.0
    %774 = vmatprep.subr.mxu0 0.0
    %775 = vmatpush1.msra.mxu0 0.0
    %776 = vmatprep.subr.mxu0 0.0
    %777 = vmatpush1.msra.mxu0 0.0
    %778 = vmatprep.subr.mxu0 0.0
    %779 = vmatpush1.msra.mxu0 0.0
    %780 = vmatprep.subr.mxu0 0.0
    %781 = vmatpush1.msra.mxu0 0.0
    %782 = vmatprep.subr.mxu0 0.0
    %783 = vmatpush1.msra.mxu0 0.0
    %784 = vmatprep.subr.mxu0 0.0
    %785 = vmatpush1.msra.mxu0 0.0
    %786 = vmatprep.subr.mxu0 0.0
    %787 = vmatpush1.msra.mxu0 0.0
    %788 = vmatprep.subr.mxu0 0.0
    %789 = vmatpush1.msra.mxu0 0.0
    %790 = vmatprep.subr.mxu0 0.0
    %791 = vmatpush1.msra.mxu0 0.0
    %792 = vmatprep.subr.mxu0 0.0
    %793 = vmatpush1.msra.mxu0 0.0
    %794 = vmatprep.subr.mxu0 0.0
    %795 = vmatpush1.msra.mxu0 0.0
    %796 = vmatprep.subr.mxu0 0.0
    %797 = vmatpush1.msra.mxu0 0.0
    %798 = vmatprep.subr.mxu0 0.0
    %799 = vmatpush1.msra.mxu0 0.0
    %800 = vmatprep.subr.mxu0 0.0
    %801 = vmatpush1.msra.mxu0 0.0
    %802 = vmatprep.subr.mxu0 0.0
    %803 = vmatpush1.msra.mxu0 0.0
    %804 = vmatprep.subr.mxu0 0.0
    %805 = vmatpush1.msra.mxu0 0.0
    %806 = vmatprep.subr.mxu0 0.0
    %807 = vmatpush1.msra.mxu0 0.0
    %808 = vmatprep.subr.mxu0 0.0
    %809 = vmatpush1.msra.mxu0 0.0
    %810 = vmatprep.subr.mxu0 0.0
    %811 = vmatpush1.msra.mxu0 0.0
    %812 = vmatprep.subr.mxu0 0.0
    %813 = vmatpush1.msra.mxu0 0.0
    %814 = vmatprep.subr.mxu0 0.0
    %815 = vmatpush1.msra.mxu0 0.0
    %816 = vmatprep.subr.mxu0 0.0
    %817 = vmatpush1.msra.mxu0 0.0
    %818 = vmatprep.subr.mxu0 0.0
    %819 = vmatpush1.msra.mxu0 0.0
    %820 = vmatprep.subr.mxu0 0.0
    %821 = vmatpush1.msra.mxu0 0.0
    %822 = vmatprep.subr.mxu0 0.0
    %823 = vmatpush1.msra.mxu0 0.0
    %824 = vmatprep.subr.mxu0 0.0
    %825 = vmatpush1.msra.mxu0 0.0
    %826 = vmatprep.subr.mxu0 0.0
    %827 = vmatpush1.msra.mxu0 0.0
    %828 = vmatprep.mubr.f32.mxu0 0.0
    %829 = vmatmul.mubr.f32.gmra.mrb[0].mxu0 %v762
    %v830 = vpop.f32.mrb[0].mxu0
    %v831 = vadd.f32 %v760, %v830
    %v832 = vpop.f32.mrb[0].mxu0
    %833 = vdwg.mxu0
    %vm834 = vcmp.ge.f32.partialorder %v831, 0.0
    %v835 = vmul.f32 %v831, 0.01
    %v836 = vsel %vm834, %v831, %v835
    %v837 = vld [vmem:[#allocation7 + $0x60] sm:$0xff]
    %v838 = vld [vmem:[#allocation7 + $0x68] sm:$0xff]
    %v839 = vld [vmem:[#allocation7 + $0x78] sm:$0x1]
    %v840 = vlaneseq
    %v841 = vshrl.u32 %v840, 7
    %v842 = vsub.s32 0, %v841
    %v843 = vrot.slane %v839, %v842
    %v845 = vsel %vm276, %v836, 0
    %847 = vmatprep.subr.mxu0 0.0
    %848 = vmatpush1.msra.mxu0 %v837
    %849 = vmatprep.subr.mxu0 0.0
    %850 = vmatpush1.msra.mxu0 %v838
    %851 = vmatprep.subr.mxu0 0.0
    %852 = vmatpush1.msra.mxu0 0.0
    %853 = vmatprep.subr.mxu0 0.0
    %854 = vmatpush1.msra.mxu0 0.0
    %855 = vmatprep.subr.mxu0 0.0
    %856 = vmatpush1.msra.mxu0 0.0
    %857 = vmatprep.subr.mxu0 0.0
    %858 = vmatpush1.msra.mxu0 0.0
    %859 = vmatprep.subr.mxu0 0.0
    %860 = vmatpush1.msra.mxu0 0.0
    %861 = vmatprep.subr.mxu0 0.0
    %862 = vmatpush1.msra.mxu0 0.0
    %863 = vmatprep.subr.mxu0 0.0
    %864 = vmatpush1.msra.mxu0 0.0
    %865 = vmatprep.subr.mxu0 0.0
    %866 = vmatpush1.msra.mxu0 0.0
    %867 = vmatprep.subr.mxu0 0.0
    %868 = vmatpush1.msra.mxu0 0.0
    %869 = vmatprep.subr.mxu0 0.0
    %870 = vmatpush1.msra.mxu0 0.0
    %871 = vmatprep.subr.mxu0 0.0
    %872 = vmatpush1.msra.mxu0 0.0
    %873 = vmatprep.subr.mxu0 0.0
    %874 = vmatpush1.msra.mxu0 0.0
    %875 = vmatprep.subr.mxu0 0.0
    %876 = vmatpush1.msra.mxu0 0.0
    %877 = vmatprep.subr.mxu0 0.0
    %878 = vmatpush1.msra.mxu0 0.0
    %879 = vmatprep.subr.mxu0 0.0
    %880 = vmatpush1.msra.mxu0 0.0
    %881 = vmatprep.subr.mxu0 0.0
    %882 = vmatpush1.msra.mxu0 0.0
    %883 = vmatprep.subr.mxu0 0.0
    %884 = vmatpush1.msra.mxu0 0.0
    %885 = vmatprep.subr.mxu0 0.0
    %886 = vmatpush1.msra.mxu0 0.0
    %887 = vmatprep.subr.mxu0 0.0
    %888 = vmatpush1.msra.mxu0 0.0
    %889 = vmatprep.subr.mxu0 0.0
    %890 = vmatpush1.msra.mxu0 0.0
    %891 = vmatprep.subr.mxu0 0.0
    %892 = vmatpush1.msra.mxu0 0.0
    %893 = vmatprep.subr.mxu0 0.0
    %894 = vmatpush1.msra.mxu0 0.0
    %895 = vmatprep.subr.mxu0 0.0
    %896 = vmatpush1.msra.mxu0 0.0
    %897 = vmatprep.subr.mxu0 0.0
    %898 = vmatpush1.msra.mxu0 0.0
    %899 = vmatprep.subr.mxu0 0.0
    %900 = vmatpush1.msra.mxu0 0.0
    %901 = vmatprep.subr.mxu0 0.0
    %902 = vmatpush1.msra.mxu0 0.0
    %903 = vmatprep.subr.mxu0 0.0
    %904 = vmatpush1.msra.mxu0 0.0
    %905 = vmatprep.subr.mxu0 0.0
    %906 = vmatpush1.msra.mxu0 0.0
    %907 = vmatprep.subr.mxu0 0.0
    %908 = vmatpush1.msra.mxu0 0.0
    %909 = vmatprep.subr.mxu0 0.0
    %910 = vmatpush1.msra.mxu0 0.0
    %911 = vmatprep.mubr.f32.mxu0 0.0
    %912 = vmatmul.mubr.f32.gmra.mrb[0].mxu0 %v845
    %v913 = vpop.f32.mrb[0].mxu0
    %v914 = vadd.f32 %v843, %v913
    %v915 = vpop.f32.mrb[0].mxu0
    %916 = vdwg.mxu0
    %v917 = vxor.u32 %v914, 2147483648
    %v918 = vmul.f32 %v917, 1.442695
    %v919 = vpow.pop %v918
    %v920 = vadd.f32 %v919, 1.0
    %v921 = vrcp.pop %v920
    %v922 = vmul.f32 1.0, %v921
    %923 = vst [vmem:[#allocation9] sm:$0xff] %v922
    // Predicated region
    $region34: #{tpu_custom_call.1} parent=1 // pred_check
      _
    $region35: #{tpu_custom_call.1} parent=1 // pred_check_branch
      %925 = sbr.rel (0) target = $region37
    $region36: #{tpu_custom_call.1} parent=1 // pred_region
      %s927 = ssub.s32 512, 512
      %928 = vsyncadd [#allocation4], %s927
      %s929 = sshll.u32 [#allocation8], 4
      %s930 = int_to_ptr.vmem [resolvable:$true] %s929
      %935 = dma.vmem_to_hbm [thread:$0]  %s930, 512, %s5, [#allocation4], 128, 128, 8
    $region37: #{tpu_custom_call.1} parent=1 // pred_fallthru
      _
    // Predicated region
    $region38: #{tpu_custom_call.1} parent=1 // pred_check
      _
    $region39: #{tpu_custom_call.1} parent=1 // pred_check_branch
      %937 = sbr.rel (0) target = $region41
    $region40: #{tpu_custom_call.1} parent=1 // pred_region
      %s939 = ssub.s32 128, 128
      %940 = vsyncadd [#allocation10], %s939
      %s942 = sshll.u32 [#allocation9], 4
      %s943 = int_to_ptr.vmem [resolvable:$true] %s942
      %945 = dma.vmem_to_hbm [thread:$0]  %s943, 128, %s6, [#allocation10]
    $region41: #{tpu_custom_call.1} parent=1 // pred_fallthru
      _
    // Predicated region
    $region42: #{tpu_custom_call.1} parent=1 // pred_check
      _
    $region43: #{tpu_custom_call.1} parent=1 // pred_check_branch
      %947 = sbr.rel (0) target = $region45
    $region44: #{tpu_custom_call.1} parent=1 // pred_region
      %948 = dma.done [#allocation4], 512
    $region45: #{tpu_custom_call.1} parent=1 // pred_fallthru
      _
    // Predicated region
    $region46: #{tpu_custom_call.1} parent=1 // pred_check
      _
    $region47: #{tpu_custom_call.1} parent=1 // pred_check_branch
      %950 = sbr.rel (0) target = $region49
    $region48: #{tpu_custom_call.1} parent=1 // pred_region
      %951 = dma.done [#allocation10], 128
    $region49: #{tpu_custom_call.1} parent=1 // pred_fallthru
      _
    %952 = vsyncpa [#allocation3], 1
    %953 = vsyncpa [#allocation6], 1
    %954 = vsyncpa [#allocation4], 1
    %955 = vsyncpa [#allocation10], 1

</llo_original>
